<compile_context>
chip_gen: v7x
topology: tpu7x:2x2x1
jax: 0.10.0
libtpu: 0.0.40
codegen_flags: <defaults>
</compile_context>

<pallas_src>
import jax
import jax.numpy as jnp
from jax.experimental import pallas as pl
from jax.experimental.pallas import tpu as pltpu


def _round_up(v, m):
    return ((v + m - 1) // m) * m


def _vmem_limit_bytes():
    """Per-generation scoped VMEM limit (v7x: 64 MiB physical, v5e/v6e: 128 MiB)."""
    cap = 64 * 1024 * 1024  # conservative fallback = v7x per-TC VMEM
    try:
        info = pltpu.get_tpu_info()
        cap = int(getattr(info, "vmem_capacity_bytes", cap))
    except Exception:
        pass
    return max(32 * 1024 * 1024, min(int(cap * 0.75), 96 * 1024 * 1024))


def _pick_tile(n_pad, target):
    """Largest multiple of 128 that divides n_pad and is <= target (>= 128)."""
    best = 128
    t = 128
    limit = min(target, n_pad)
    while t <= limit:
        if n_pad % t == 0:
            best = t
        t += 128
    return best


def _make_agg_kernel(activation, out_valid, tk, feat_resident):
    """One GCN layer row-tile: out = act((sum_k A[i,k] @ F[k]) @ W + b)."""

    def kernel(adj_ref, feat_ref, w_ref, b_ref, out_ref, acc_ref):
        k = pl.program_id(1)

        @pl.when(k == 0)
        def _():
            acc_ref[...] = jnp.zeros_like(acc_ref)

        if feat_resident:
            # Whole feature matrix lives in VMEM; slice the aligned K chunk.
            start = pl.multiple_of(k * tk, tk)
            fk = feat_ref[pl.ds(start, tk), :]
        else:
            fk = feat_ref[...]

        # Aggregation: native bf16 x bf16 MXU matmul with f32 accumulation.
        acc_ref[...] += jnp.dot(adj_ref[...], fk, preferred_element_type=jnp.float32)

        @pl.when(k == pl.num_programs(1) - 1)
        def _():
            # Weight matmul (f32, once per row tile) + bias + activation.
            y = (
                jnp.dot(acc_ref[...], w_ref[...], preferred_element_type=jnp.float32)
                + b_ref[...]
            )
            if activation == "relu":
                # Padded lanes of W/b are zero -> relu(0) = 0, no masking needed.
                out_ref[...] = jnp.maximum(y, 0.0).astype(out_ref.dtype)
            else:  # log_softmax over the first `out_valid` (real) lanes only
                col = jax.lax.broadcasted_iota(jnp.int32, y.shape, 1)
                y = jnp.where(col < out_valid, y, -1e30)
                m = jnp.max(y, axis=1, keepdims=True)
                z = y - m
                lse = jnp.log(jnp.sum(jnp.exp(z), axis=1, keepdims=True))
                out_ref[...] = (z - lse).astype(out_ref.dtype)

    return kernel


def _gcn_agg_layer(adj_bf16, feat_bf16, w, b, *, activation, out_valid, out_dtype,
                   tm_target=512, tk_target=2048):
    """One GCNConv layer: act(A @ feat @ W + b), A-row tiled + K reduction."""
    n_pad = adj_bf16.shape[0]
    f_in = feat_bf16.shape[1]
    f_out = w.shape[1]

    vmem_limit = _vmem_limit_bytes()
    budget = int(vmem_limit * 0.8)

    # Keep >= 2 row tiles whenever possible so v7x megacore shards the 'parallel' axis.
    tm_cap = tm_target if n_pad < 256 else min(tm_target, n_pad // 2)
    tm = _pick_tile(n_pad, max(128, tm_cap))
    tk = _pick_tile(n_pad, tk_target)

    out_bytes = jnp.dtype(out_dtype).itemsize

    def vmem_use(feat_resident, tk_):
        a = 2 * tm * tk_ * 2                                   # A tile (bf16, 2 bufs)
        f = 2 * (n_pad if feat_resident else tk_) * f_in * 2   # features (bf16)
        wb = 2 * f_in * f_out * 4 + 2 * f_out * 4              # W + b (f32, resident)
        o = 2 * tm * f_out * out_bytes                         # output tile
        acc = tm * f_in * 4                                    # f32 accumulator
        return a + f + wb + o + acc

    feat_resident = vmem_use(True, tk) <= budget
    while (not feat_resident) and vmem_use(False, tk) > budget and tk > 128:
        tk = _pick_tile(n_pad, tk - 128)

    grid = (n_pad // tm, n_pad // tk)

    if feat_resident:
        feat_spec = pl.BlockSpec((n_pad, f_in), lambda i, k: (0, 0))   # DMA'd once
    else:
        feat_spec = pl.BlockSpec((tk, f_in), lambda i, k: (k, 0))      # streamed

    return pl.pallas_call(
        _make_agg_kernel(activation, out_valid, tk, feat_resident),
        out_shape=jax.ShapeDtypeStruct((n_pad, f_out), out_dtype),
        grid_spec=pltpu.PrefetchScalarGridSpec(
            num_scalar_prefetch=0,
            grid=grid,
            in_specs=[
                pl.BlockSpec((tm, tk), lambda i, k: (i, k)),   # A tile (bf16 stream)
                feat_spec,                                     # features (bf16)
                pl.BlockSpec(w.shape, lambda i, k: (0, 0)),    # W (f32, resident)
                pl.BlockSpec((1, f_out), lambda i, k: (0, 0)), # bias (resident)
            ],
            out_specs=pl.BlockSpec((tm, f_out), lambda i, k: (i, 0)),
            scratch_shapes=[pltpu.VMEM((tm, f_in), jnp.float32)],      # f32 accumulator
        ),
        compiler_params=pltpu.CompilerParams(
            dimension_semantics=("parallel", "arbitrary"),
            vmem_limit_bytes=vmem_limit,
        ),
    )(adj_bf16, feat_bf16, w, b)


def gcn_forward(x, edge_index, w1, b1, w2, b2, *, tm_target=512, tk_target=2048):
    """Full GCN forward. x: (N, Cin) f32, edge_index: (2, E) int32."""
    n, in_c = x.shape
    hid_c = w1.shape[1]
    out_c = w2.shape[1]

    LANE = 128
    # Pad node dim only to the lane width (tiles are chosen as divisors of n_pad, so
    # padding never quadratically inflates A); pad feature dims to lane width.
    n_pad = _round_up(n, LANE)
    in_p = _round_up(in_c, LANE)
    hid_p = _round_up(hid_c, LANE)
    out_p = _round_up(out_c, LANE)

    # Dense aggregation matrix A[dst, src] = edge count, built DIRECTLY in bf16
    # (duplicate-edge counts <= 256 are exact in bf16; matches PyG 'add' aggregation).
    src, dst = edge_index[0], edge_index[1]
    adj = jnp.zeros((n_pad, n_pad), jnp.bfloat16).at[dst, src].add(1.0)

    # bf16 features (MXU-native aggregation operand); weights/bias stay f32
    # (weight matmul runs once per row tile on the f32 accumulator).
    xp = jnp.zeros((n_pad, in_p), jnp.bfloat16).at[:n, :in_c].set(x.astype(jnp.bfloat16))
    w1p = jnp.zeros((in_p, hid_p), jnp.float32).at[:in_c, :hid_c].set(w1)
    b1p = jnp.zeros((1, hid_p), jnp.float32).at[0, :hid_c].set(b1)
    w2p = jnp.zeros((hid_p, out_p), jnp.float32).at[:hid_c, :out_c].set(w2)
    b2p = jnp.zeros((1, out_p), jnp.float32).at[0, :out_c].set(b2)

    # Layer 1: relu(A @ X @ W1 + b1), emitted in bf16 so layer 2 consumes it directly.
    h = _gcn_agg_layer(
        adj, xp, w1p, b1p,
        activation="relu", out_valid=hid_p, out_dtype=jnp.bfloat16,
        tm_target=tm_target, tk_target=tk_target,
    )

    # Dropout: identity at inference (module eval mode).
    # TODO(synk): training-mode dropout (random masking) not implemented.

    # Layer 2 + masked log_softmax over the real output lanes (f32 output).
    y = _gcn_agg_layer(
        adj, h, w2p, b2p,
        activation="log_softmax", out_valid=out_c, out_dtype=jnp.float32,
        tm_target=tm_target, tk_target=tk_target,
    )
    return y[:n, :out_c]


if __name__ == "__main__":
    key = jax.random.PRNGKey(0)

    N = 16      # number of nodes
    IN_C = 8    # in_channels
    HID_C = 32  # hidden_channels
    OUT_C = 8   # out_channels
    E = 40      # number of edges

    k_x, k_e1, k_e2, k_w1, k_w2 = jax.random.split(key, 5)

    x = jax.random.normal(k_x, (N, IN_C), jnp.float32)
    edge_index = jnp.stack(
        [
            jax.random.randint(k_e1, (E,), 0, N),
            jax.random.randint(k_e2, (E,), 0, N),
        ]
    ).astype(jnp.int32)

    # Deterministic Glorot-style init for GCNConv weights, zero biases.
    w1 = jax.random.normal(k_w1, (IN_C, HID_C), jnp.float32) * (2.0 / (IN_C + HID_C)) ** 0.5
    b1 = jnp.zeros((HID_C,), jnp.float32)
    w2 = jax.random.normal(k_w2, (HID_C, OUT_C), jnp.float32) * (2.0 / (HID_C + OUT_C)) ** 0.5
    b2 = jnp.zeros((OUT_C,), jnp.float32)

    out = gcn_forward(x, edge_index, w1, b1, w2, b2)
    out = jax.block_until_ready(out)

    adj_ref = jnp.zeros((N, N), jnp.float32).at[edge_index[1], edge_index[0]].add(1.0)

    # Reference 1: precision-matched to the kernel (bf16 features into the
    # aggregation matmul, f32 accumulate, same (A @ X) @ W ordering).
    xb = x.astype(jnp.bfloat16).astype(jnp.float32)
    h_m = jnp.maximum((adj_ref @ xb) @ w1 + b1, 0.0)
    hb = h_m.astype(jnp.bfloat16).astype(jnp.float32)
    ref_m = jax.nn.log_softmax((adj_ref @ hb) @ w2 + b2, axis=1)
    assert out.shape == ref_m.shape, "shape mismatch vs reference"
    assert jnp.allclose(out, ref_m, atol=1e-2, rtol=1e-2), "mismatch vs matched reference"

    # Reference 2: pure-f32 module semantics (loose tolerance covers the bf16 path).
    h_f = jnp.maximum(adj_ref @ (x @ w1) + b1, 0.0)
    ref_f = jax.nn.log_softmax(adj_ref @ (h_f @ w2) + b2, axis=1)
    assert jnp.allclose(out, ref_f, atol=5e-2, rtol=5e-2), "mismatch vs f32 reference"

    print("KERNEL_OK")
</pallas_src>

<mosaic_0001>
module attributes {stable_mosaic.version = 11 : i64} {
  func.func @kernel(%arg0: i32, %arg1: i32, %arg2: memref<128x128xbf16, #tpu.memory_space<vmem>>, %arg3: memref<128x128xbf16, #tpu.memory_space<vmem>>, %arg4: memref<128x128xf32, #tpu.memory_space<vmem>>, %arg5: memref<1x128xf32, #tpu.memory_space<vmem>>, %arg6: memref<128x128xbf16, #tpu.memory_space<vmem>>, %arg7: memref<128x128xf32, #tpu.memory_space<vmem>>) attributes {dimension_semantics = [#tpu.dimension_semantics<parallel>, #tpu.dimension_semantics<arbitrary>], iteration_bounds = array<i64: 1, 1>, scalar_prefetch = 0 : i64, scratch_operands = 1 : i64, tpu.core_type = #tpu.core_type<tc>, window_params = [{transform_indices = @transform_0, window_bounds = array<i64: 128, 128>}, {pipeline_mode = #tpu.pipeline_mode<synchronous>, transform_indices = @transform_1, window_bounds = array<i64: 128, 128>}, {pipeline_mode = #tpu.pipeline_mode<synchronous>, transform_indices = @transform_2, window_bounds = array<i64: 128, 128>}, {pipeline_mode = #tpu.pipeline_mode<synchronous>, transform_indices = @transform_3, window_bounds = array<i64: 1, 128>}, {transform_indices = @transform_4, window_bounds = array<i64: 128, 128>}]} {
    %c0_i32 = arith.constant 0 : i32
    %0 = arith.cmpi eq, %arg1, %c0_i32 : i32
    %1 = arith.extui %0 : i1 to i32
    %c0_i32_0 = arith.constant 0 : i32
    %2 = arith.cmpi ne, %1, %c0_i32_0 : i32
    scf.if %2 {
      %cst_9 = arith.constant 0.000000e+00 : f32
      %15 = vector.broadcast %cst_9 : f32 to vector<128x128xf32>
      %c0_10 = arith.constant 0 : index
      %c0_11 = arith.constant 0 : index
      %16 = vector.load %arg7[%c0_10, %c0_11] : memref<128x128xf32, #tpu.memory_space<vmem>>, vector<128x128xf32>
      tpu.vector_store %arg7[%c0_10, %c0_11], %15 {strides = array<i32>} : memref<128x128xf32, #tpu.memory_space<vmem>>, vector<128x128xf32>,
    } else {
    }
    %c128_i32 = arith.constant 128 : i32
    %3 = arith.muli %arg1, %c128_i32 : i32
    %4 = tpu.assume_multiple %3, 128 : i32
    %5 = arith.index_cast %4 : i32 to index
    %c0 = arith.constant 0 : index
    %6 = vector.load %arg3[%5, %c0] : memref<128x128xbf16, #tpu.memory_space<vmem>>, vector<128x128xbf16>
    %c0_1 = arith.constant 0 : index
    %c0_2 = arith.constant 0 : index
    %7 = vector.load %arg7[%c0_1, %c0_2] : memref<128x128xf32, #tpu.memory_space<vmem>>, vector<128x128xf32>
    %c0_3 = arith.constant 0 : index
    %c0_4 = arith.constant 0 : index
    %8 = vector.load %arg2[%c0_3, %c0_4] : memref<128x128xbf16, #tpu.memory_space<vmem>>, vector<128x128xbf16>
    %cst = arith.constant dense<0.000000e+00> : vector<128x128xf32>
    %9 = tpu.matmul %8, %6, %cst {dimension_numbers = #tpu.dot_dimension_numbers<[1], [0], [0], [1], [0, 0, 1, 1], [], []>} : vector<128x128xbf16>, vector<128x128xbf16>, vector<128x128xf32> -> vector<128x128xf32>
    %10 = arith.addf %7, %9 : vector<128x128xf32>
    %c0_5 = arith.constant 0 : index
    %c0_6 = arith.constant 0 : index
    %11 = vector.load %arg7[%c0_5, %c0_6] : memref<128x128xf32, #tpu.memory_space<vmem>>, vector<128x128xf32>
    tpu.vector_store %arg7[%c0_5, %c0_6], %10 {strides = array<i32>} : memref<128x128xf32, #tpu.memory_space<vmem>>, vector<128x128xf32>,
    %c0_i32_7 = arith.constant 0 : i32
    %12 = arith.cmpi eq, %arg1, %c0_i32_7 : i32
    %13 = arith.extui %12 : i1 to i32
    %c0_i32_8 = arith.constant 0 : i32
    %14 = arith.cmpi ne, %13, %c0_i32_8 : i32
    scf.if %14 {
      %c0_9 = arith.constant 0 : index
      %c0_10 = arith.constant 0 : index
      %15 = vector.load %arg7[%c0_9, %c0_10] : memref<128x128xf32, #tpu.memory_space<vmem>>, vector<128x128xf32>
      %c0_11 = arith.constant 0 : index
      %c0_12 = arith.constant 0 : index
      %16 = vector.load %arg4[%c0_11, %c0_12] : memref<128x128xf32, #tpu.memory_space<vmem>>, vector<128x128xf32>
      %cst_13 = arith.constant dense<0.000000e+00> : vector<128x128xf32>
      %17 = tpu.matmul %15, %16, %cst_13 {dimension_numbers = #tpu.dot_dimension_numbers<[1], [0], [0], [1], [0, 0, 1, 1], [], []>} : vector<128x128xf32>, vector<128x128xf32>, vector<128x128xf32> -> vector<128x128xf32>
      %c0_14 = arith.constant 0 : index
      %c0_15 = arith.constant 0 : index
      %18 = vector.load %arg5[%c0_14, %c0_15] : memref<1x128xf32, #tpu.memory_space<vmem>>, vector<1x128xf32>
      %19 = vector.broadcast %18 : vector<1x128xf32> to vector<128x128xf32>
      %20 = arith.addf %17, %19 : vector<128x128xf32>
      %cst_16 = arith.constant 0.000000e+00 : f32
      %21 = vector.broadcast %cst_16 : f32 to vector<128x128xf32>
      %22 = arith.maximumf %20, %21 : vector<128x128xf32>
      %23 = arith.truncf %22 : vector<128x128xf32> to vector<128x128xbf16>
      %c0_17 = arith.constant 0 : index
      %c0_18 = arith.constant 0 : index
      %24 = vector.load %arg6[%c0_17, %c0_18] : memref<128x128xbf16, #tpu.memory_space<vmem>>, vector<128x128xbf16>
      tpu.vector_store %arg6[%c0_17, %c0_18], %23 {strides = array<i32>} : memref<128x128xbf16, #tpu.memory_space<vmem>>, vector<128x128xbf16>,
    } else {
    }
    return
  }
  func.func @transform_0(%arg0: i32, %arg1: i32) -> (i32, i32) {
    %c0_i32 = arith.constant 0 : i32
    return %arg0, %arg1 : i32, i32
  }
  func.func @transform_1(%arg0: i32, %arg1: i32) -> (i32, i32) {
    %c0_i32 = arith.constant 0 : i32
    %c0_i32_0 = arith.constant 0 : i32
    %c0_i32_1 = arith.constant 0 : i32
    return %c0_i32, %c0_i32_0 : i32, i32
  }
  func.func @transform_2(%arg0: i32, %arg1: i32) -> (i32, i32) {
    %c0_i32 = arith.constant 0 : i32
    %c0_i32_0 = arith.constant 0 : i32
    %c0_i32_1 = arith.constant 0 : i32
    return %c0_i32, %c0_i32_0 : i32, i32
  }
  func.func @transform_3(%arg0: i32, %arg1: i32) -> (i32, i32) {
    %c0_i32 = arith.constant 0 : i32
    %c0_i32_0 = arith.constant 0 : i32
    %c0_i32_1 = arith.constant 0 : i32
    return %c0_i32, %c0_i32_0 : i32, i32
  }
  func.func @transform_4(%arg0: i32, %arg1: i32) -> (i32, i32) {
    %c0_i32 = arith.constant 0 : i32
    %c0_i32_0 = arith.constant 0 : i32
    return %arg0, %c0_i32 : i32, i32
  }
}

</mosaic_0001>

<llo_original>
// kernel: tpu_custom_call.1
$region0: #{tpu_custom_call.1}
  #allocation0 [shape = 'u32[]', space=smem, size = 0x4, offset = 0x4, fixed_abs, tag = 'smem constant byte address 0x4 - core index']
  #allocation1 [shape = 'u32[144,128]{1,0:T(1,128)}', space=vmem, size = 0x12000, scoped, tag = 'internal scratch']
  #allocation2 [shape = 'f32[128,128]{1,0:T(8,128)}', space=vmem, size = 0x10000, scoped, tag = 'scratch operand']
  %s0 = inlined_call_operand.hbm [shape: bf16[128,128], index: 0, kind: input, shape index: {}]
  %s1 = inlined_call_operand.hbm [shape: bf16[128,128], index: 1, kind: input, shape index: {}]
  %s2 = inlined_call_operand.hbm [shape: f32[128,128], index: 2, kind: input, shape index: {}]
  %s3 = inlined_call_operand.vmem [shape: f32[1,128], index: 3, kind: input, shape index: {}]
  %s4 = inlined_call_operand.hbm [shape: bf16[128,128], index: 4, kind: output, shape index: {}]
  %s5 = sld [smem:[#allocation0]]
  $region46: #{tpu_custom_call.1} parent=0
    _
  %s7 = ssub.s32 1, %s5
  %s8 = scalar_select 0, %s7, %s5
  $region1: #{tpu_custom_call.1} parent=0
    #allocation3 [shape = 'u8[32768]{0}', space=vmem, size = 0x8000, scoped, tag = 'input window, operand 0, single buffered']
    #allocation4 [shape = 's32[1]{0}', space=sflag, size = 0x4, scoped, tag = 'scoped memory for tpu_custom_call.1']
    #allocation5 [shape = 's32[1]{0}', space=sflag, size = 0x4, scoped, tag = 'scoped memory for tpu_custom_call.1']
    #allocation6 [shape = 'u8[32768]{0}', space=vmem, size = 0x8000, scoped, tag = 'input window, operand 1, single buffered']
    #allocation7 [shape = 's32[1]{0}', space=sflag, size = 0x4, scoped, tag = 'scoped memory for tpu_custom_call.1']
    #allocation8 [shape = 'u8[65536]{0}', space=vmem, size = 0x10000, scoped, tag = 'input window, operand 2, single buffered']
    #allocation9 [shape = 'u8[32768]{0}', space=vmem, size = 0x8000, scoped, tag = 'output window, operand 0, single buffered']
    %9 = vsyncpa [#allocation4], 0
    %10 = vsyncpa [#allocation7], 0
    %11 = vsyncpa [#allocation5], 0
    // Predicated region
    $region2: #{tpu_custom_call.1} parent=1 // pred_check
      _
    $region3: #{tpu_custom_call.1} parent=1 // pred_check_branch
      %13 = sbr.rel (0) target = $region5
    $region4: #{tpu_custom_call.1} parent=1 // pred_region
      %s15 = ssub.s32 1024, 1024
      %16 = vsyncadd [#allocation4], %s15
      %s17 = sshll.u32 [#allocation3], 4
      %s18 = int_to_ptr.vmem [resolvable:$true] %s17
      %23 = dma.hbm_to_vmem [thread:$0]  %s0, 1024, %s18, [#allocation4], 64, 64, 4
    $region5: #{tpu_custom_call.1} parent=1 // pred_fallthru
      _
    // Predicated region
    $region6: #{tpu_custom_call.1} parent=1 // pred_check
      _
    $region7: #{tpu_custom_call.1} parent=1 // pred_check_branch
      %25 = sbr.rel (0) target = $region9
    $region8: #{tpu_custom_call.1} parent=1 // pred_region
      %s27 = ssub.s32 1024, 1024
      %28 = vsyncadd [#allocation7], %s27
      %s29 = sshll.u32 [#allocation6], 4
      %s30 = int_to_ptr.vmem [resolvable:$true] %s29
      %35 = dma.hbm_to_vmem [thread:$0]  %s1, 1024, %s30, [#allocation7], 64, 64, 4
    $region9: #{tpu_custom_call.1} parent=1 // pred_fallthru
      _
    // Predicated region
    $region10: #{tpu_custom_call.1} parent=1 // pred_check
      _
    $region11: #{tpu_custom_call.1} parent=1 // pred_check_branch
      %37 = sbr.rel (0) target = $region13
    $region12: #{tpu_custom_call.1} parent=1 // pred_region
      %s39 = ssub.s32 2048, 2048
      %40 = vsyncadd [#allocation7], %s39
      %s41 = sshll.u32 [#allocation8], 4
      %s42 = int_to_ptr.vmem [resolvable:$true] %s41
      %47 = dma.hbm_to_vmem [thread:$0]  %s2, 2048, %s42, [#allocation7], 128, 128, 8
    $region13: #{tpu_custom_call.1} parent=1 // pred_fallthru
      _
    // Predicated region
    $region14: #{tpu_custom_call.1} parent=1 // pred_check
      _
    $region15: #{tpu_custom_call.1} parent=1 // pred_check_branch
      %49 = sbr.rel (0) target = $region17
    $region16: #{tpu_custom_call.1} parent=1 // pred_region
      _
    $region17: #{tpu_custom_call.1} parent=1 // pred_fallthru
      _
    // Predicated region
    $region18: #{tpu_custom_call.1} parent=1 // pred_check
      _
    $region19: #{tpu_custom_call.1} parent=1 // pred_check_branch
      %51 = sbr.rel (0) target = $region21
    $region20: #{tpu_custom_call.1} parent=1 // pred_region
      %52 = dma.done [#allocation4], 1024
    $region21: #{tpu_custom_call.1} parent=1 // pred_fallthru
      _
    // Predicated region
    $region22: #{tpu_custom_call.1} parent=1 // pred_check
      _
    $region23: #{tpu_custom_call.1} parent=1 // pred_check_branch
      %54 = sbr.rel (0) target = $region25
    $region24: #{tpu_custom_call.1} parent=1 // pred_region
      %55 = dma.done [#allocation7], 1024
    $region25: #{tpu_custom_call.1} parent=1 // pred_fallthru
      _
    // Predicated region
    $region26: #{tpu_custom_call.1} parent=1 // pred_check
      _
    $region27: #{tpu_custom_call.1} parent=1 // pred_check_branch
      %57 = sbr.rel (0) target = $region29
    $region28: #{tpu_custom_call.1} parent=1 // pred_region
      %58 = dma.done [#allocation7], 2048
    $region29: #{tpu_custom_call.1} parent=1 // pred_fallthru
      _
    %p60 = scmp.eq.s32.totalorder 0, 0
    // Predicated region
    $region30: #{tpu_custom_call.1} parent=1 // pred_check
      %p61 = pneg %p60
    $region31: #{tpu_custom_call.1} parent=1 // pred_check_branch
      %63 = sbr.rel (%p61) target = $region33
    $region32: #{tpu_custom_call.1} parent=1 // pred_region
      %64 = vst [vmem:[#allocation2] sm:$0xff] 0.0
      %65 = vst [vmem:[#allocation2 + $0x8] sm:$0xff] 0.0
      %66 = vst [vmem:[#allocation2 + $0x10] sm:$0xff] 0.0
      %67 = vst [vmem:[#allocation2 + $0x18] sm:$0xff] 0.0
      %68 = vst [vmem:[#allocation2 + $0x20] sm:$0xff] 0.0
      %69 = vst [vmem:[#allocation2 + $0x28] sm:$0xff] 0.0
      %70 = vst [vmem:[#allocation2 + $0x30] sm:$0xff] 0.0
      %71 = vst [vmem:[#allocation2 + $0x38] sm:$0xff] 0.0
      %72 = vst [vmem:[#allocation2 + $0x40] sm:$0xff] 0.0
      %73 = vst [vmem:[#allocation2 + $0x48] sm:$0xff] 0.0
      %74 = vst [vmem:[#allocation2 + $0x50] sm:$0xff] 0.0
      %75 = vst [vmem:[#allocation2 + $0x58] sm:$0xff] 0.0
      %76 = vst [vmem:[#allocation2 + $0x60] sm:$0xff] 0.0
      %77 = vst [vmem:[#allocation2 + $0x68] sm:$0xff] 0.0
      %78 = vst [vmem:[#allocation2 + $0x70] sm:$0xff] 0.0
      %79 = vst [vmem:[#allocation2 + $0x78] sm:$0xff] 0.0
    $region33: #{tpu_custom_call.1} parent=1 // pred_fallthru
      _
    %s80 = smul.u32 0, 128
    %s81 = sshra.s32 %s80, 3
    %s82 = sand.u32 %s80, 7
    %s83 = smul.addr %s81, 4
    %s84 = scalar_lea.vmem [#allocation6], %s83
    %v85 = vld [vmem:[%s84] sm:$0xf]
    %v86 = vld [vmem:[%s84 + $0x4] sm:$0xf]
    %v87 = vld [vmem:[%s84 + $0x8] sm:$0xf]
    %v88 = vld [vmem:[%s84 + $0xc] sm:$0xf]
    %v89 = vld [vmem:[%s84 + $0x10] sm:$0xf]
    %v90 = vld [vmem:[%s84 + $0x14] sm:$0xf]
    %v91 = vld [vmem:[%s84 + $0x18] sm:$0xf]
    %v92 = vld [vmem:[%s84 + $0x1c] sm:$0xf]
    %v93 = vld [vmem:[%s84 + $0x20] sm:$0xf]
    %v94 = vld [vmem:[%s84 + $0x24] sm:$0xf]
    %v95 = vld [vmem:[%s84 + $0x28] sm:$0xf]
    %v96 = vld [vmem:[%s84 + $0x2c] sm:$0xf]
    %v97 = vld [vmem:[%s84 + $0x30] sm:$0xf]
    %v98 = vld [vmem:[%s84 + $0x34] sm:$0xf]
    %v99 = vld [vmem:[%s84 + $0x38] sm:$0xf]
    %v100 = vld [vmem:[%s84 + $0x3c] sm:$0xf]
    %v101 = vld [vmem:[#allocation2] sm:$0xff]
    %v102 = vld [vmem:[#allocation2 + $0x8] sm:$0xff]
    %v103 = vld [vmem:[#allocation2 + $0x10] sm:$0xff]
    %v104 = vld [vmem:[#allocation2 + $0x18] sm:$0xff]
    %v105 = vld [vmem:[#allocation2 + $0x20] sm:$0xff]
    %v106 = vld [vmem:[#allocation2 + $0x28] sm:$0xff]
    %v107 = vld [vmem:[#allocation2 + $0x30] sm:$0xff]
    %v108 = vld [vmem:[#allocation2 + $0x38] sm:$0xff]
    %v109 = vld [vmem:[#allocation2 + $0x40] sm:$0xff]
    %v110 = vld [vmem:[#allocation2 + $0x48] sm:$0xff]
    %v111 = vld [vmem:[#allocation2 + $0x50] sm:$0xff]
    %v112 = vld [vmem:[#allocation2 + $0x58] sm:$0xff]
    %v113 = vld [vmem:[#allocation2 + $0x60] sm:$0xff]
    %v114 = vld [vmem:[#allocation2 + $0x68] sm:$0xff]
    %v115 = vld [vmem:[#allocation2 + $0x70] sm:$0xff]
    %v116 = vld [vmem:[#allocation2 + $0x78] sm:$0xff]
    %v117 = vld [vmem:[#allocation3] sm:$0xf]
    %v118 = vld [vmem:[#allocation3 + $0x4] sm:$0xf]
    %v119 = vld [vmem:[#allocation3 + $0x8] sm:$0xf]
    %v120 = vld [vmem:[#allocation3 + $0xc] sm:$0xf]
    %v121 = vld [vmem:[#allocation3 + $0x10] sm:$0xf]
    %v122 = vld [vmem:[#allocation3 + $0x14] sm:$0xf]
    %v123 = vld [vmem:[#allocation3 + $0x18] sm:$0xf]
    %v124 = vld [vmem:[#allocation3 + $0x1c] sm:$0xf]
    %v125 = vld [vmem:[#allocation3 + $0x20] sm:$0xf]
    %v126 = vld [vmem:[#allocation3 + $0x24] sm:$0xf]
    %v127 = vld [vmem:[#allocation3 + $0x28] sm:$0xf]
    %v128 = vld [vmem:[#allocation3 + $0x2c] sm:$0xf]
    %v129 = vld [vmem:[#allocation3 + $0x30] sm:$0xf]
    %v130 = vld [vmem:[#allocation3 + $0x34] sm:$0xf]
    %v131 = vld [vmem:[#allocation3 + $0x38] sm:$0xf]
    %v132 = vld [vmem:[#allocation3 + $0x3c] sm:$0xf]
    %v149 = vunpack.c.l.b16 %v117
    %v150 = vunpack.c.l.b16 %v118
    %v151 = vunpack.c.l.b16 %v119
    %v152 = vunpack.c.l.b16 %v120
    %v153 = vunpack.c.l.b16 %v121
    %v154 = vunpack.c.l.b16 %v122
    %v155 = vunpack.c.l.b16 %v123
    %v156 = vunpack.c.l.b16 %v124
    %v157 = vunpack.c.l.b16 %v125
    %v158 = vunpack.c.l.b16 %v126
    %v159 = vunpack.c.l.b16 %v127
    %v160 = vunpack.c.l.b16 %v128
    %v161 = vunpack.c.l.b16 %v129
    %v162 = vunpack.c.l.b16 %v130
    %v163 = vunpack.c.l.b16 %v131
    %v164 = vunpack.c.l.b16 %v132
    %v165 = vpack.c.b16 %v150, %v149
    %v166 = vpack.c.b16 %v152, %v151
    %v167 = vpack.c.b16 %v154, %v153
    %v168 = vpack.c.b16 %v156, %v155
    %v169 = vpack.c.b16 %v158, %v157
    %v170 = vpack.c.b16 %v160, %v159
    %v171 = vpack.c.b16 %v162, %v161
    %v172 = vpack.c.b16 %v164, %v163
    %v197 = vunpack.c.l.b16 %v85
    %v198 = vunpack.c.l.b16 %v86
    %v199 = vunpack.c.l.b16 %v87
    %v200 = vunpack.c.l.b16 %v88
    %v201 = vunpack.c.l.b16 %v89
    %v202 = vunpack.c.l.b16 %v90
    %v203 = vunpack.c.l.b16 %v91
    %v204 = vunpack.c.l.b16 %v92
    %v205 = vunpack.c.l.b16 %v93
    %v206 = vunpack.c.l.b16 %v94
    %v207 = vunpack.c.l.b16 %v95
    %v208 = vunpack.c.l.b16 %v96
    %v209 = vunpack.c.l.b16 %v97
    %v210 = vunpack.c.l.b16 %v98
    %v211 = vunpack.c.l.b16 %v99
    %v212 = vunpack.c.l.b16 %v100
    %v213 = vpack.c.b16 %v198, %v197
    %v214 = vpack.c.b16 %v200, %v199
    %v215 = vpack.c.b16 %v202, %v201
    %v216 = vpack.c.b16 %v204, %v203
    %v217 = vpack.c.b16 %v206, %v205
    %v218 = vpack.c.b16 %v208, %v207
    %v219 = vpack.c.b16 %v210, %v209
    %v220 = vpack.c.b16 %v212, %v211
    %229 = vmatprep.subr.bf16.mxu0 0
    %230 = vmatpush1.bf16.msra.mxu0 %v213
    %231 = vmatprep.subr.bf16.mxu0 0
    %232 = vmatpush1.bf16.msra.mxu0 %v214
    %233 = vmatprep.subr.bf16.mxu0 0
    %234 = vmatpush1.bf16.msra.mxu0 %v215
    %235 = vmatprep.subr.bf16.mxu0 0
    %236 = vmatpush1.bf16.msra.mxu0 %v216
    %237 = vmatprep.subr.bf16.mxu0 0
    %238 = vmatpush1.bf16.msra.mxu0 %v217
    %239 = vmatprep.subr.bf16.mxu0 0
    %240 = vmatpush1.bf16.msra.mxu0 %v218
    %241 = vmatprep.subr.bf16.mxu0 0
    %242 = vmatpush1.bf16.msra.mxu0 %v219
    %243 = vmatprep.subr.bf16.mxu0 0
    %244 = vmatpush1.bf16.msra.mxu0 %v220
    %245 = vmatprep.subr.bf16.mxu0 0
    %246 = vmatpush1.bf16.msra.mxu0 0
    %247 = vmatprep.subr.bf16.mxu0 0
    %248 = vmatpush1.bf16.msra.mxu0 0
    %249 = vmatprep.subr.bf16.mxu0 0
    %250 = vmatpush1.bf16.msra.mxu0 0
    %251 = vmatprep.subr.bf16.mxu0 0
    %252 = vmatpush1.bf16.msra.mxu0 0
    %253 = vmatprep.subr.bf16.mxu0 0
    %254 = vmatpush1.bf16.msra.mxu0 0
    %255 = vmatprep.subr.bf16.mxu0 0
    %256 = vmatpush1.bf16.msra.mxu0 0
    %257 = vmatprep.subr.bf16.mxu0 0
    %258 = vmatpush1.bf16.msra.mxu0 0
    %259 = vmatprep.subr.bf16.mxu0 0
    %260 = vmatpush1.bf16.msra.mxu0 0
    %261 = vmatprep.mubr.bf16.mxu0 0
    %262 = vmatmul.mubr.bf16.gmra.mrb[0].mxu0 %v165
    %v263 = vpop.f32.mrb[0].mxu0
    %v264 = vadd.f32 0.0, %v263
    %v265 = vpop.f32.mrb[0].mxu0
    %v266 = vpop.f32.mrb[0].mxu0
    %v267 = vadd.f32 0.0, %v266
    %v268 = vpop.f32.mrb[0].mxu0
    %269 = vmatprep.mubr.bf16.mxu0 0
    %270 = vmatmul.mubr.bf16.gmra.mrb[0].mxu0 %v166
    %v271 = vpop.f32.mrb[0].mxu0
    %v272 = vadd.f32 0.0, %v271
    %v273 = vpop.f32.mrb[0].mxu0
    %v274 = vpop.f32.mrb[0].mxu0
    %v275 = vadd.f32 0.0, %v274
    %v276 = vpop.f32.mrb[0].mxu0
    %277 = vmatprep.mubr.bf16.mxu0 0
    %278 = vmatmul.mubr.bf16.gmra.mrb[0].mxu0 %v167
    %v279 = vpop.f32.mrb[0].mxu0
    %v280 = vadd.f32 0.0, %v279
    %v281 = vpop.f32.mrb[0].mxu0
    %v282 = vpop.f32.mrb[0].mxu0
    %v283 = vadd.f32 0.0, %v282
    %v284 = vpop.f32.mrb[0].mxu0
    %285 = vmatprep.mubr.bf16.mxu0 0
    %286 = vmatmul.mubr.bf16.gmra.mrb[0].mxu0 %v168
    %v287 = vpop.f32.mrb[0].mxu0
    %v288 = vadd.f32 0.0, %v287
    %v289 = vpop.f32.mrb[0].mxu0
    %v290 = vpop.f32.mrb[0].mxu0
    %v291 = vadd.f32 0.0, %v290
    %v292 = vpop.f32.mrb[0].mxu0
    %293 = vmatprep.mubr.bf16.mxu0 0
    %294 = vmatmul.mubr.bf16.gmra.mrb[0].mxu0 %v169
    %v295 = vpop.f32.mrb[0].mxu0
    %v296 = vadd.f32 0.0, %v295
    %v297 = vpop.f32.mrb[0].mxu0
    %v298 = vpop.f32.mrb[0].mxu0
    %v299 = vadd.f32 0.0, %v298
    %v300 = vpop.f32.mrb[0].mxu0
    %301 = vmatprep.mubr.bf16.mxu0 0
    %302 = vmatmul.mubr.bf16.gmra.mrb[0].mxu0 %v170
    %v303 = vpop.f32.mrb[0].mxu0
    %v304 = vadd.f32 0.0, %v303
    %v305 = vpop.f32.mrb[0].mxu0
    %v306 = vpop.f32.mrb[0].mxu0
    %v307 = vadd.f32 0.0, %v306
    %v308 = vpop.f32.mrb[0].mxu0
    %309 = vmatprep.mubr.bf16.mxu0 0
    %310 = vmatmul.mubr.bf16.gmra.mrb[0].mxu0 %v171
    %v311 = vpop.f32.mrb[0].mxu0
    %v312 = vadd.f32 0.0, %v311
    %v313 = vpop.f32.mrb[0].mxu0
    %v314 = vpop.f32.mrb[0].mxu0
    %v315 = vadd.f32 0.0, %v314
    %v316 = vpop.f32.mrb[0].mxu0
    %317 = vmatprep.mubr.bf16.mxu0 0
    %318 = vmatmul.mubr.bf16.gmra.mrb[0].mxu0 %v172
    %v319 = vpop.f32.mrb[0].mxu0
    %v320 = vadd.f32 0.0, %v319
    %v321 = vpop.f32.mrb[0].mxu0
    %v322 = vpop.f32.mrb[0].mxu0
    %v323 = vadd.f32 0.0, %v322
    %v324 = vpop.f32.mrb[0].mxu0
    %325 = vdwg.mxu0
    %v326 = vadd.f32 %v101, %v264
    %v327 = vadd.f32 %v102, %v267
    %v328 = vadd.f32 %v103, %v272
    %v329 = vadd.f32 %v104, %v275
    %v330 = vadd.f32 %v105, %v280
    %v331 = vadd.f32 %v106, %v283
    %v332 = vadd.f32 %v107, %v288
    %v333 = vadd.f32 %v108, %v291
    %v334 = vadd.f32 %v109, %v296
    %v335 = vadd.f32 %v110, %v299
    %v336 = vadd.f32 %v111, %v304
    %v337 = vadd.f32 %v112, %v307
    %v338 = vadd.f32 %v113, %v312
    %v339 = vadd.f32 %v114, %v315
    %v340 = vadd.f32 %v115, %v320
    %v341 = vadd.f32 %v116, %v323
    %342 = vst [vmem:[#allocation2] sm:$0xff] %v326
    %343 = vst [vmem:[#allocation2 + $0x8] sm:$0xff] %v327
    %344 = vst [vmem:[#allocation2 + $0x10] sm:$0xff] %v328
    %345 = vst [vmem:[#allocation2 + $0x18] sm:$0xff] %v329
    %346 = vst [vmem:[#allocation2 + $0x20] sm:$0xff] %v330
    %347 = vst [vmem:[#allocation2 + $0x28] sm:$0xff] %v331
    %348 = vst [vmem:[#allocation2 + $0x30] sm:$0xff] %v332
    %349 = vst [vmem:[#allocation2 + $0x38] sm:$0xff] %v333
    %350 = vst [vmem:[#allocation2 + $0x40] sm:$0xff] %v334
    %351 = vst [vmem:[#allocation2 + $0x48] sm:$0xff] %v335
    %352 = vst [vmem:[#allocation2 + $0x50] sm:$0xff] %v336
    %353 = vst [vmem:[#allocation2 + $0x58] sm:$0xff] %v337
    %354 = vst [vmem:[#allocation2 + $0x60] sm:$0xff] %v338
    %355 = vst [vmem:[#allocation2 + $0x68] sm:$0xff] %v339
    %356 = vst [vmem:[#allocation2 + $0x70] sm:$0xff] %v340
    %357 = vst [vmem:[#allocation2 + $0x78] sm:$0xff] %v341
    // Predicated region
    $region34: #{tpu_custom_call.1} parent=1 // pred_check
      %p358 = pneg %p60
    $region35: #{tpu_custom_call.1} parent=1 // pred_check_branch
      %360 = sbr.rel (%p358) target = $region37
    $region36: #{tpu_custom_call.1} parent=1 // pred_region
      %v361 = vld [vmem:[#allocation2] sm:$0xff]
      %v362 = vld [vmem:[#allocation2 + $0x8] sm:$0xff]
      %v363 = vld [vmem:[#allocation2 + $0x10] sm:$0xff]
      %v364 = vld [vmem:[#allocation2 + $0x18] sm:$0xff]
      %v365 = vld [vmem:[#allocation2 + $0x20] sm:$0xff]
      %v366 = vld [vmem:[#allocation2 + $0x28] sm:$0xff]
      %v367 = vld [vmem:[#allocation2 + $0x30] sm:$0xff]
      %v368 = vld [vmem:[#allocation2 + $0x38] sm:$0xff]
      %v369 = vld [vmem:[#allocation2 + $0x40] sm:$0xff]
      %v370 = vld [vmem:[#allocation2 + $0x48] sm:$0xff]
      %v371 = vld [vmem:[#allocation2 + $0x50] sm:$0xff]
      %v372 = vld [vmem:[#allocation2 + $0x58] sm:$0xff]
      %v373 = vld [vmem:[#allocation2 + $0x60] sm:$0xff]
      %v374 = vld [vmem:[#allocation2 + $0x68] sm:$0xff]
      %v375 = vld [vmem:[#allocation2 + $0x70] sm:$0xff]
      %v376 = vld [vmem:[#allocation2 + $0x78] sm:$0xff]
      %v377 = vld [vmem:[#allocation8] sm:$0xff]
      %v378 = vld [vmem:[#allocation8 + $0x8] sm:$0xff]
      %v379 = vld [vmem:[#allocation8 + $0x10] sm:$0xff]
      %v380 = vld [vmem:[#allocation8 + $0x18] sm:$0xff]
      %v381 = vld [vmem:[#allocation8 + $0x20] sm:$0xff]
      %v382 = vld [vmem:[#allocation8 + $0x28] sm:$0xff]
      %v383 = vld [vmem:[#allocation8 + $0x30] sm:$0xff]
      %v384 = vld [vmem:[#allocation8 + $0x38] sm:$0xff]
      %v385 = vld [vmem:[#allocation8 + $0x40] sm:$0xff]
      %v386 = vld [vmem:[#allocation8 + $0x48] sm:$0xff]
      %v387 = vld [vmem:[#allocation8 + $0x50] sm:$0xff]
      %v388 = vld [vmem:[#allocation8 + $0x58] sm:$0xff]
      %v389 = vld [vmem:[#allocation8 + $0x60] sm:$0xff]
      %v390 = vld [vmem:[#allocation8 + $0x68] sm:$0xff]
      %v391 = vld [vmem:[#allocation8 + $0x70] sm:$0xff]
      %v392 = vld [vmem:[#allocation8 + $0x78] sm:$0xff]
      %v393 = vld [vmem:[%s3] sm:$0x1]
      %v395 = vlaneseq
      %v396 = vshrl.u32 %v395, 7
      %v397 = vsub.s32 0, %v396
      %v398 = vrot.slane %v393, %v397
      %400 = vmatprep.subr.mxu0 0.0
      %401 = vmatpush1.msra.mxu0 %v377
      %402 = vmatprep.subr.mxu0 0.0
      %403 = vmatpush1.msra.mxu0 %v378
      %404 = vmatprep.subr.mxu0 0.0
      %405 = vmatpush1.msra.mxu0 %v379
      %406 = vmatprep.subr.mxu0 0.0
      %407 = vmatpush1.msra.mxu0 %v380
      %408 = vmatprep.subr.mxu0 0.0
      %409 = vmatpush1.msra.mxu0 %v381
      %410 = vmatprep.subr.mxu0 0.0
      %411 = vmatpush1.msra.mxu0 %v382
      %412 = vmatprep.subr.mxu0 0.0
      %413 = vmatpush1.msra.mxu0 %v383
      %414 = vmatprep.subr.mxu0 0.0
      %415 = vmatpush1.msra.mxu0 %v384
      %416 = vmatprep.subr.mxu0 0.0
      %417 = vmatpush1.msra.mxu0 %v385
      %418 = vmatprep.subr.mxu0 0.0
      %419 = vmatpush1.msra.mxu0 %v386
      %420 = vmatprep.subr.mxu0 0.0
      %421 = vmatpush1.msra.mxu0 %v387
      %422 = vmatprep.subr.mxu0 0.0
      %423 = vmatpush1.msra.mxu0 %v388
      %424 = vmatprep.subr.mxu0 0.0
      %425 = vmatpush1.msra.mxu0 %v389
      %426 = vmatprep.subr.mxu0 0.0
      %427 = vmatpush1.msra.mxu0 %v390
      %428 = vmatprep.subr.mxu0 0.0
      %429 = vmatpush1.msra.mxu0 %v391
      %430 = vmatprep.subr.mxu0 0.0
      %431 = vmatpush1.msra.mxu0 %v392
      %432 = vmatprep.subr.mxu0 0.0
      %433 = vmatpush1.msra.mxu0 0.0
      %434 = vmatprep.subr.mxu0 0.0
      %435 = vmatpush1.msra.mxu0 0.0
      %436 = vmatprep.subr.mxu0 0.0
      %437 = vmatpush1.msra.mxu0 0.0
      %438 = vmatprep.subr.mxu0 0.0
      %439 = vmatpush1.msra.mxu0 0.0
      %440 = vmatprep.subr.mxu0 0.0
      %441 = vmatpush1.msra.mxu0 0.0
      %442 = vmatprep.subr.mxu0 0.0
      %443 = vmatpush1.msra.mxu0 0.0
      %444 = vmatprep.subr.mxu0 0.0
      %445 = vmatpush1.msra.mxu0 0.0
      %446 = vmatprep.subr.mxu0 0.0
      %447 = vmatpush1.msra.mxu0 0.0
      %448 = vmatprep.subr.mxu0 0.0
      %449 = vmatpush1.msra.mxu0 0.0
      %450 = vmatprep.subr.mxu0 0.0
      %451 = vmatpush1.msra.mxu0 0.0
      %452 = vmatprep.subr.mxu0 0.0
      %453 = vmatpush1.msra.mxu0 0.0
      %454 = vmatprep.subr.mxu0 0.0
      %455 = vmatpush1.msra.mxu0 0.0
      %456 = vmatprep.subr.mxu0 0.0
      %457 = vmatpush1.msra.mxu0 0.0
      %458 = vmatprep.subr.mxu0 0.0
      %459 = vmatpush1.msra.mxu0 0.0
      %460 = vmatprep.subr.mxu0 0.0
      %461 = vmatpush1.msra.mxu0 0.0
      %462 = vmatprep.subr.mxu0 0.0
      %463 = vmatpush1.msra.mxu0 0.0
      %464 = vmatprep.mubr.f32.mxu0 0.0
      %465 = vmatmul.mubr.f32.gmra.mrb[0].mxu0 %v361
      %v466 = vpop.f32.mrb[0].mxu0
      %v467 = vadd.f32 %v398, %v466
      %v468 = vpop.f32.mrb[0].mxu0
      %469 = vmatprep.mubr.f32.mxu0 0.0
      %470 = vmatmul.mubr.f32.gmra.mrb[0].mxu0 %v362
      %v471 = vpop.f32.mrb[0].mxu0
      %v472 = vadd.f32 %v398, %v471
      %v473 = vpop.f32.mrb[0].mxu0
      %474 = vmatprep.mubr.f32.mxu0 0.0
      %475 = vmatmul.mubr.f32.gmra.mrb[0].mxu0 %v363
      %v476 = vpop.f32.mrb[0].mxu0
      %v477 = vadd.f32 %v398, %v476
      %v478 = vpop.f32.mrb[0].mxu0
      %479 = vmatprep.mubr.f32.mxu0 0.0
      %480 = vmatmul.mubr.f32.gmra.mrb[0].mxu0 %v364
      %v481 = vpop.f32.mrb[0].mxu0
      %v482 = vadd.f32 %v398, %v481
      %v483 = vpop.f32.mrb[0].mxu0
      %484 = vmatprep.mubr.f32.mxu0 0.0
      %485 = vmatmul.mubr.f32.gmra.mrb[0].mxu0 %v365
      %v486 = vpop.f32.mrb[0].mxu0
      %v487 = vadd.f32 %v398, %v486
      %v488 = vpop.f32.mrb[0].mxu0
      %489 = vmatprep.mubr.f32.mxu0 0.0
      %490 = vmatmul.mubr.f32.gmra.mrb[0].mxu0 %v366
      %v491 = vpop.f32.mrb[0].mxu0
      %v492 = vadd.f32 %v398, %v491
      %v493 = vpop.f32.mrb[0].mxu0
      %494 = vmatprep.mubr.f32.mxu0 0.0
      %495 = vmatmul.mubr.f32.gmra.mrb[0].mxu0 %v367
      %v496 = vpop.f32.mrb[0].mxu0
      %v497 = vadd.f32 %v398, %v496
      %v498 = vpop.f32.mrb[0].mxu0
      %499 = vmatprep.mubr.f32.mxu0 0.0
      %500 = vmatmul.mubr.f32.gmra.mrb[0].mxu0 %v368
      %v501 = vpop.f32.mrb[0].mxu0
      %v502 = vadd.f32 %v398, %v501
      %v503 = vpop.f32.mrb[0].mxu0
      %504 = vmatprep.mubr.f32.mxu0 0.0
      %505 = vmatmul.mubr.f32.gmra.mrb[0].mxu0 %v369
      %v506 = vpop.f32.mrb[0].mxu0
      %v507 = vadd.f32 %v398, %v506
      %v508 = vpop.f32.mrb[0].mxu0
      %509 = vmatprep.mubr.f32.mxu0 0.0
      %510 = vmatmul.mubr.f32.gmra.mrb[0].mxu0 %v370
      %v511 = vpop.f32.mrb[0].mxu0
      %v512 = vadd.f32 %v398, %v511
      %v513 = vpop.f32.mrb[0].mxu0
      %514 = vmatprep.mubr.f32.mxu0 0.0
      %515 = vmatmul.mubr.f32.gmra.mrb[0].mxu0 %v371
      %v516 = vpop.f32.mrb[0].mxu0
      %v517 = vadd.f32 %v398, %v516
      %v518 = vpop.f32.mrb[0].mxu0
      %519 = vmatprep.mubr.f32.mxu0 0.0
      %520 = vmatmul.mubr.f32.gmra.mrb[0].mxu0 %v372
      %v521 = vpop.f32.mrb[0].mxu0
      %v522 = vadd.f32 %v398, %v521
      %v523 = vpop.f32.mrb[0].mxu0
      %524 = vmatprep.mubr.f32.mxu0 0.0
      %525 = vmatmul.mubr.f32.gmra.mrb[0].mxu0 %v373
      %v526 = vpop.f32.mrb[0].mxu0
      %v527 = vadd.f32 %v398, %v526
      %v528 = vpop.f32.mrb[0].mxu0
      %529 = vmatprep.mubr.f32.mxu0 0.0
      %530 = vmatmul.mubr.f32.gmra.mrb[0].mxu0 %v374
      %v531 = vpop.f32.mrb[0].mxu0
      %v532 = vadd.f32 %v398, %v531
      %v533 = vpop.f32.mrb[0].mxu0
      %534 = vmatprep.mubr.f32.mxu0 0.0
      %535 = vmatmul.mubr.f32.gmra.mrb[0].mxu0 %v375
      %v536 = vpop.f32.mrb[0].mxu0
      %v537 = vadd.f32 %v398, %v536
      %v538 = vpop.f32.mrb[0].mxu0
      %539 = vmatprep.mubr.f32.mxu0 0.0
      %540 = vmatmul.mubr.f32.gmra.mrb[0].mxu0 %v376
      %v541 = vpop.f32.mrb[0].mxu0
      %v542 = vadd.f32 %v398, %v541
      %v543 = vpop.f32.mrb[0].mxu0
      %544 = vdwg.mxu0
      %v545 = vmax.f32 %v467, 0.0
      %v546 = vmax.f32 %v472, 0.0
      %v547 = vmax.f32 %v477, 0.0
      %v548 = vmax.f32 %v482, 0.0
      %v549 = vmax.f32 %v487, 0.0
      %v550 = vmax.f32 %v492, 0.0
      %v551 = vmax.f32 %v497, 0.0
      %v552 = vmax.f32 %v502, 0.0
      %v553 = vmax.f32 %v507, 0.0
      %v554 = vmax.f32 %v512, 0.0
      %v555 = vmax.f32 %v517, 0.0
      %v556 = vmax.f32 %v522, 0.0
      %v557 = vmax.f32 %v527, 0.0
      %v558 = vmax.f32 %v532, 0.0
      %v559 = vmax.f32 %v537, 0.0
      %v560 = vmax.f32 %v542, 0.0
      %v561 = vpack.c.bf16 %v546, %v545
      %v562 = vpack.c.bf16 %v548, %v547
      %v563 = vpack.c.bf16 %v550, %v549
      %v564 = vpack.c.bf16 %v552, %v551
      %v565 = vpack.c.bf16 %v554, %v553
      %v566 = vpack.c.bf16 %v556, %v555
      %v567 = vpack.c.bf16 %v558, %v557
      %v568 = vpack.c.bf16 %v560, %v559
      %v577 = vunpack.c.l.b16 %v561
      %v578 = vunpack.c.h.b16 %v561
      %v579 = vunpack.c.l.b16 %v562
      %v580 = vunpack.c.h.b16 %v562
      %v581 = vunpack.c.l.b16 %v563
      %v582 = vunpack.c.h.b16 %v563
      %v583 = vunpack.c.l.b16 %v564
      %v584 = vunpack.c.h.b16 %v564
      %v585 = vunpack.c.l.b16 %v565
      %v586 = vunpack.c.h.b16 %v565
      %v587 = vunpack.c.l.b16 %v566
      %v588 = vunpack.c.h.b16 %v566
      %v589 = vunpack.c.l.b16 %v567
      %v590 = vunpack.c.h.b16 %v567
      %v591 = vunpack.c.l.b16 %v568
      %v592 = vunpack.c.h.b16 %v568
      %v593 = vpack.c.b16 %v577, %v577
      %v594 = vpack.c.b16 %v578, %v578
      %v595 = vpack.c.b16 %v579, %v579
      %v596 = vpack.c.b16 %v580, %v580
      %v597 = vpack.c.b16 %v581, %v581
      %v598 = vpack.c.b16 %v582, %v582
      %v599 = vpack.c.b16 %v583, %v583
      %v600 = vpack.c.b16 %v584, %v584
      %v601 = vpack.c.b16 %v585, %v585
      %v602 = vpack.c.b16 %v586, %v586
      %v603 = vpack.c.b16 %v587, %v587
      %v604 = vpack.c.b16 %v588, %v588
      %v605 = vpack.c.b16 %v589, %v589
      %v606 = vpack.c.b16 %v590, %v590
      %v607 = vpack.c.b16 %v591, %v591
      %v608 = vpack.c.b16 %v592, %v592
      %625 = vst [vmem:[#allocation9] sm:$0xf] %v593
      %626 = vst [vmem:[#allocation9 + $0x4] sm:$0xf] %v594
      %627 = vst [vmem:[#allocation9 + $0x8] sm:$0xf] %v595
      %628 = vst [vmem:[#allocation9 + $0xc] sm:$0xf] %v596
      %629 = vst [vmem:[#allocation9 + $0x10] sm:$0xf] %v597
      %630 = vst [vmem:[#allocation9 + $0x14] sm:$0xf] %v598
      %631 = vst [vmem:[#allocation9 + $0x18] sm:$0xf] %v599
      %632 = vst [vmem:[#allocation9 + $0x1c] sm:$0xf] %v600
      %633 = vst [vmem:[#allocation9 + $0x20] sm:$0xf] %v601
      %634 = vst [vmem:[#allocation9 + $0x24] sm:$0xf] %v602
      %635 = vst [vmem:[#allocation9 + $0x28] sm:$0xf] %v603
      %636 = vst [vmem:[#allocation9 + $0x2c] sm:$0xf] %v604
      %637 = vst [vmem:[#allocation9 + $0x30] sm:$0xf] %v605
      %638 = vst [vmem:[#allocation9 + $0x34] sm:$0xf] %v606
      %639 = vst [vmem:[#allocation9 + $0x38] sm:$0xf] %v607
      %640 = vst [vmem:[#allocation9 + $0x3c] sm:$0xf] %v608
    $region37: #{tpu_custom_call.1} parent=1 // pred_fallthru
      _
    // Predicated region
    $region38: #{tpu_custom_call.1} parent=1 // pred_check
      _
    $region39: #{tpu_custom_call.1} parent=1 // pred_check_branch
      %642 = sbr.rel (0) target = $region41
    $region40: #{tpu_custom_call.1} parent=1 // pred_region
      %s644 = ssub.s32 1024, 1024
      %645 = vsyncadd [#allocation5], %s644
      %s646 = sshll.u32 [#allocation9], 4
      %s647 = int_to_ptr.vmem [resolvable:$true] %s646
      %652 = dma.vmem_to_hbm [thread:$0]  %s647, 1024, %s4, [#allocation5], 64, 64, 4
    $region41: #{tpu_custom_call.1} parent=1 // pred_fallthru
      _
    // Predicated region
    $region42: #{tpu_custom_call.1} parent=1 // pred_check
      _
    $region43: #{tpu_custom_call.1} parent=1 // pred_check_branch
      %654 = sbr.rel (0) target = $region45
    $region44: #{tpu_custom_call.1} parent=1 // pred_region
      %655 = dma.done [#allocation5], 1024
    $region45: #{tpu_custom_call.1} parent=1 // pred_fallthru
      _
    %656 = vsyncpa [#allocation4], 1
    %657 = vsyncpa [#allocation7], 1
    %658 = vsyncpa [#allocation5], 1

</llo_original>
